<compile_context>
chip_gen: v7x
topology: tpu7x:2x2x1
jax: 0.10.0
libtpu: 0.0.40
codegen_flags: <defaults>
</compile_context>

<pallas_src>
import functools

import jax
import jax.numpy as jnp
from jax.experimental import pallas as pl
from jax.experimental.pallas import tpu as pltpu


def _round_up(x, m):
    return ((x + m - 1) // m) * m


# -----------------------------------------------------------------------------
# Single fused Pallas kernel:
#   normalize -> enc -> mu/logvar -> reparam -> dec -> motion||displacement
# -----------------------------------------------------------------------------
def _fused_forward_kernel(x_ref, eps_ref,
                          nsc_ref, nof_ref,        # normalize scale/offset (1, TF)
                          dsc_ref, dof_ref,        # denorm scale/offset (1, N_head)
                          we_ref, be_ref,
                          wml_ref, bml_ref,
                          wd_ref, bd_ref,
                          wh_ref, bh_ref,
                          head_ref, stats_ref, *, latent_dim):
    L = latent_dim

    # normalize: (x - mean) / std  ==  x * inv_std + (-mean * inv_std)   [VPU]
    x = x_ref[...] * nsc_ref[...] + nof_ref[...]

    # encoder
    h_enc = jnp.dot(x, we_ref[...], preferred_element_type=jnp.float32) + be_ref[...]
    h_enc = jnp.maximum(h_enc, 0.0)

    # fused mu || logvar head: one wide matmul on the shared activation
    ml = jnp.dot(h_enc, wml_ref[...], preferred_element_type=jnp.float32) + bml_ref[...]
    mu = ml[:, :L]
    logvar = ml[:, L:2 * L]

    # reparameterization (exp -> EUP, mul/add -> VPU; free under MXU slack)
    latent = mu + jnp.exp(0.5 * logvar) * eps_ref[...]

    # decoder
    h_dec = jnp.dot(latent, wd_ref[...], preferred_element_type=jnp.float32) + bd_ref[...]
    h_dec = jnp.maximum(h_dec, 0.0)

    # fused motion || displacement || zero-pad head; denormalize the motion
    # columns with full-width scale/offset vectors -> single lane-dense store.
    head = jnp.dot(h_dec, wh_ref[...], preferred_element_type=jnp.float32) + bh_ref[...]
    head_ref[...] = (head * dsc_ref[...] + dof_ref[...]).astype(head_ref.dtype)

    # pack mu || logvar || latent || zero-pad and write ONE full-width row
    pad = stats_ref.shape[1] - 3 * L
    parts = [ml, latent]
    if pad:
        parts.append(jnp.zeros((stats_ref.shape[0], pad), jnp.float32))
    stats_ref[...] = jnp.concatenate(parts, axis=-1).astype(stats_ref.dtype)


@functools.partial(jax.jit, static_argnames=("disp_dim",))
def _generator_forward(motion, mean_dqs, std_dqs, eps_key,
                       W_enc, b_enc, W_ml, b_ml,
                       W_dec, b_dec, W_head, b_head, *, disp_dim):
    f32 = jnp.float32
    B, T, F = motion.shape
    TF = T * F
    H = W_enc.shape[1]
    L = W_ml.shape[1] // 2
    D = disp_dim
    TD = T * D
    N_head = W_head.shape[1]                       # lane-dense fused head width
    B_pad = _round_up(max(B, 8), 8)                # sublane-aligned batch
    stats_w = _round_up(max(3 * L, 128), 128)      # lane-dense stats slab width

    # --- tiny per-call vectors: normalize / denormalize scale+offset ---------
    mean_tf = jnp.tile(mean_dqs.astype(f32), T)    # (TF,)
    std_tf = jnp.tile(std_dqs.astype(f32), T)
    inv_std = 1.0 / std_tf
    norm_scale = inv_std.reshape(1, TF)
    norm_offset = (-mean_tf * inv_std).reshape(1, TF)
    tail = N_head - TF
    denorm_scale = jnp.concatenate([std_tf, jnp.ones((tail,), f32)]).reshape(1, N_head)
    denorm_offset = jnp.concatenate([mean_tf, jnp.zeros((tail,), f32)]).reshape(1, N_head)

    # --- reparameterization noise generated inside the jit --------------------
    eps = jax.random.normal(eps_key, (B, L), f32)

    # --- batch-pad inputs to full sublanes ------------------------------------
    x_pad = jnp.pad(motion.astype(f32).reshape(B, TF), ((0, B_pad - B), (0, 0)))
    eps_pad = jnp.pad(eps, ((0, B_pad - B), (0, 0)))

    vmem = pl.BlockSpec(memory_space=pltpu.MemorySpace.VMEM)

    head_out, stats_out = pl.pallas_call(
        functools.partial(_fused_forward_kernel, latent_dim=L),
        out_shape=(
            jax.ShapeDtypeStruct((B_pad, N_head), f32),
            jax.ShapeDtypeStruct((B_pad, stats_w), f32),
        ),
        in_specs=[vmem] * 14,
        out_specs=(vmem, vmem),
    )(x_pad, eps_pad,
      norm_scale, norm_offset, denorm_scale, denorm_offset,
      W_enc, b_enc, W_ml, b_ml, W_dec, b_dec, W_head, b_head)

    res_motion = head_out[:B, :TF].reshape(B, T, F)
    res_displacement = head_out[:B, TF:TF + TD].reshape(B, T, D)
    mu = stats_out[:B, 0:L]
    logvar = stats_out[:B, L:2 * L]
    latent = stats_out[:B, 2 * L:3 * L]
    return res_motion, res_displacement, mu, logvar, latent


# -----------------------------------------------------------------------------
# Pure-JAX (un-fused) reference for correctness verification
# -----------------------------------------------------------------------------
def _reference_forward(weights, motion, mean_dqs, std_dqs, eps):
    (W_enc, b_enc, W_mu, b_mu, W_lv, b_lv,
     W_dec, b_dec, W_mot, b_mot, W_dsp, b_dsp) = weights
    hp = jax.lax.Precision.HIGHEST
    B, T, F = motion.shape
    D = W_dsp.shape[1] // T
    x = (motion - mean_dqs.reshape(1, 1, F)) / std_dqs.reshape(1, 1, F)
    x = x.reshape(B, T * F)
    h = jnp.maximum(jnp.dot(x, W_enc, precision=hp) + b_enc, 0.0)
    mu = jnp.dot(h, W_mu, precision=hp) + b_mu
    lv = jnp.dot(h, W_lv, precision=hp) + b_lv
    lat = mu + jnp.exp(0.5 * lv) * eps
    hd = jnp.maximum(jnp.dot(lat, W_dec, precision=hp) + b_dec, 0.0)
    mot = (jnp.dot(hd, W_mot, precision=hp) + b_mot).reshape(B, T, F)
    mot = mot * std_dqs.reshape(1, 1, F) + mean_dqs.reshape(1, 1, F)
    dsp = (jnp.dot(hd, W_dsp, precision=hp) + b_dsp).reshape(B, T, D)
    return mot, dsp, mu, lv, lat


# -----------------------------------------------------------------------------
# Generator model (forward pass only)
# -----------------------------------------------------------------------------
class GeneratorModelPallas:
    """Mirrors Generator_Model.forward(): returns (res_motion, res_displacement).

    # TODO(synk): compute_losses / optimize_parameters / sample (AdamW, grad
    # clipping, MSE_DQ loss, torch.normal sampling) are training-host utilities
    # with no Pallas forward-pass equivalent and are intentionally not here.
    """

    def __init__(self, param, key):
        self.param = param
        T, F = param["frames"], param["dq_dim"]
        H, L, D = param["hidden_dim"], param["latent_dim"], param["disp_dim"]
        TF, TD = T * F, T * D
        f32 = jnp.float32

        ks = jax.random.split(key, 8)
        s = 0.02  # deterministic small-scale init

        # encoder
        self.W_enc = s * jax.random.normal(ks[0], (TF, H), f32)
        self.b_enc = jnp.zeros((H,), f32)
        self.W_mu = s * jax.random.normal(ks[1], (H, L), f32)
        self.b_mu = jnp.zeros((L,), f32)
        self.W_lv = s * jax.random.normal(ks[2], (H, L), f32)
        self.b_lv = jnp.zeros((L,), f32)

        # decoder
        self.W_dec = s * jax.random.normal(ks[3], (L, H), f32)
        self.b_dec = jnp.zeros((H,), f32)
        self.W_mot = s * jax.random.normal(ks[4], (H, TF), f32)
        self.b_mot = jnp.zeros((TF,), f32)
        self.W_dsp = s * jax.random.normal(ks[5], (H, TD), f32)
        self.b_dsp = jnp.zeros((TD,), f32)

        # ---- static fused/padded weights (built ONCE, not per call) ----------
        # mu || logvar head (one wide matmul in the kernel)
        self.W_ml = jnp.concatenate([self.W_mu, self.W_lv], axis=1)
        self.b_ml = jnp.concatenate([self.b_mu, self.b_lv]).reshape(1, 2 * L)
        # motion || displacement || zero-pad head, lane-padded to multiple of 128
        N_head = _round_up(TF + TD, 128)
        pad_cols = N_head - (TF + TD)
        self.W_head = jnp.concatenate(
            [self.W_mot, self.W_dsp, jnp.zeros((H, pad_cols), f32)], axis=1)
        self.b_head = jnp.concatenate(
            [self.b_mot, self.b_dsp, jnp.zeros((pad_cols,), f32)]).reshape(1, N_head)
        # 2-D bias copies for lane-broadcast inside the kernel
        self.b_enc2 = self.b_enc.reshape(1, H)
        self.b_dec2 = self.b_dec.reshape(1, H)

        # deterministic reparameterization noise key
        self.eps_key = ks[6]

        n_params = sum(p.size for p in (
            self.W_enc, self.b_enc, self.W_mu, self.b_mu, self.W_lv, self.b_lv,
            self.W_dec, self.b_dec, self.W_mot, self.b_mot, self.W_dsp, self.b_dsp))
        print("# parameters generator:", n_params)

    def forward(self, motion, mean_dqs, std_dqs):
        res_motion, res_disp, mu, logvar, latent = _generator_forward(
            motion, mean_dqs, std_dqs, self.eps_key,
            self.W_enc, self.b_enc2, self.W_ml, self.b_ml,
            self.W_dec, self.b_dec2, self.W_head, self.b_head,
            disp_dim=self.param["disp_dim"])
        self.mu, self.logvar, self.latent = mu, logvar, latent
        return res_motion, res_disp


# -----------------------------------------------------------------------------
# Driver
# -----------------------------------------------------------------------------
if __name__ == "__main__":
    param = {
        "batch": 2,        # B
        "frames": 8,       # T
        "dq_dim": 32,      # F = 4 joints * 8 dual-quaternion components
        "hidden_dim": 32,  # H
        "latent_dim": 16,  # L
        "disp_dim": 3,     # root displacement per frame
    }

    key = jax.random.PRNGKey(0)
    k_model, k_motion, k_mean, k_std = jax.random.split(key, 4)

    B, T, F = param["batch"], param["frames"], param["dq_dim"]
    D, L = param["disp_dim"], param["latent_dim"]

    motion = jax.random.normal(k_motion, (B, T, F), jnp.float32)
    mean_dqs = 0.1 * jax.random.normal(k_mean, (F,), jnp.float32)
    std_dqs = jnp.abs(jax.random.normal(k_std, (F,), jnp.float32)) + 0.5

    model = GeneratorModelPallas(param, k_model)
    res_motion, res_displacement = model.forward(motion, mean_dqs, std_dqs)

    jax.block_until_ready(res_motion)
    jax.block_until_ready(res_displacement)

    assert res_motion.shape == (B, T, F)
    assert res_displacement.shape == (B, T, D)
    assert model.mu.shape == (B, L)
    assert model.logvar.shape == (B, L)
    assert model.latent.shape == (B, L)
    assert jnp.all(jnp.isfinite(res_motion))
    assert jnp.all(jnp.isfinite(res_displacement))

    # Verify the fused kernel against the un-fused pure-JAX reference.
    # eps is generated from the same key inside the jit, so regenerate it here.
    eps = jax.random.normal(model.eps_key, (B, L), jnp.float32)
    weights = (model.W_enc, model.b_enc, model.W_mu, model.b_mu,
               model.W_lv, model.b_lv, model.W_dec, model.b_dec,
               model.W_mot, model.b_mot, model.W_dsp, model.b_dsp)
    ref_mot, ref_dsp, ref_mu, ref_lv, ref_lat = _reference_forward(
        weights, motion, mean_dqs, std_dqs, eps)
    assert jnp.allclose(res_motion, ref_mot, rtol=5e-2, atol=5e-3)
    assert jnp.allclose(res_displacement, ref_dsp, rtol=5e-2, atol=5e-3)
    assert jnp.allclose(model.mu, ref_mu, rtol=5e-2, atol=5e-3)
    assert jnp.allclose(model.logvar, ref_lv, rtol=5e-2, atol=5e-3)
    assert jnp.allclose(model.latent, ref_lat, rtol=5e-2, atol=5e-3)

    print("KERNEL_OK")
</pallas_src>

<mosaic_0001>
module attributes {stable_mosaic.version = 11 : i64} {
  func.func @_fused_forward_kernel(%arg0: memref<8x256xf32, #tpu.memory_space<vmem>>, %arg1: memref<8x16xf32, #tpu.memory_space<vmem>>, %arg2: memref<1x256xf32, #tpu.memory_space<vmem>>, %arg3: memref<1x256xf32, #tpu.memory_space<vmem>>, %arg4: memref<1x384xf32, #tpu.memory_space<vmem>>, %arg5: memref<1x384xf32, #tpu.memory_space<vmem>>, %arg6: memref<256x32xf32, #tpu.memory_space<vmem>>, %arg7: memref<1x32xf32, #tpu.memory_space<vmem>>, %arg8: memref<32x32xf32, #tpu.memory_space<vmem>>, %arg9: memref<1x32xf32, #tpu.memory_space<vmem>>, %arg10: memref<16x32xf32, #tpu.memory_space<vmem>>, %arg11: memref<1x32xf32, #tpu.memory_space<vmem>>, %arg12: memref<32x384xf32, #tpu.memory_space<vmem>>, %arg13: memref<1x384xf32, #tpu.memory_space<vmem>>, %arg14: memref<8x384xf32, #tpu.memory_space<vmem>>, %arg15: memref<8x128xf32, #tpu.memory_space<vmem>>) attributes {dimension_semantics = [], scalar_prefetch = 0 : i64, scratch_operands = 0 : i64, tpu.core_type = #tpu.core_type<tc>} {
    %c0 = arith.constant 0 : index
    %c0_0 = arith.constant 0 : index
    %0 = vector.load %arg0[%c0, %c0_0] : memref<8x256xf32, #tpu.memory_space<vmem>>, vector<8x256xf32>
    %c0_1 = arith.constant 0 : index
    %c0_2 = arith.constant 0 : index
    %1 = vector.load %arg2[%c0_1, %c0_2] : memref<1x256xf32, #tpu.memory_space<vmem>>, vector<1x256xf32>
    %2 = vector.broadcast %1 : vector<1x256xf32> to vector<8x256xf32>
    %3 = arith.mulf %0, %2 : vector<8x256xf32>
    %c0_3 = arith.constant 0 : index
    %c0_4 = arith.constant 0 : index
    %4 = vector.load %arg3[%c0_3, %c0_4] : memref<1x256xf32, #tpu.memory_space<vmem>>, vector<1x256xf32>
    %5 = vector.broadcast %4 : vector<1x256xf32> to vector<8x256xf32>
    %6 = arith.addf %3, %5 : vector<8x256xf32>
    %c0_5 = arith.constant 0 : index
    %c0_6 = arith.constant 0 : index
    %7 = vector.load %arg6[%c0_5, %c0_6] : memref<256x32xf32, #tpu.memory_space<vmem>>, vector<256x32xf32>
    %cst = arith.constant dense<0.000000e+00> : vector<8x32xf32>
    %8 = tpu.matmul %6, %7, %cst {dimension_numbers = #tpu.dot_dimension_numbers<[1], [0], [0], [1], [0, 0, 1, 1], [], []>} : vector<8x256xf32>, vector<256x32xf32>, vector<8x32xf32> -> vector<8x32xf32>
    %c0_7 = arith.constant 0 : index
    %c0_8 = arith.constant 0 : index
    %9 = vector.load %arg7[%c0_7, %c0_8] : memref<1x32xf32, #tpu.memory_space<vmem>>, vector<1x32xf32>
    %10 = vector.broadcast %9 : vector<1x32xf32> to vector<8x32xf32>
    %11 = arith.addf %8, %10 : vector<8x32xf32>
    %cst_9 = arith.constant 0.000000e+00 : f32
    %12 = vector.broadcast %cst_9 : f32 to vector<8x32xf32>
    %13 = arith.maximumf %11, %12 : vector<8x32xf32>
    %c0_10 = arith.constant 0 : index
    %c0_11 = arith.constant 0 : index
    %14 = vector.load %arg8[%c0_10, %c0_11] : memref<32x32xf32, #tpu.memory_space<vmem>>, vector<32x32xf32>
    %cst_12 = arith.constant dense<0.000000e+00> : vector<8x32xf32>
    %15 = tpu.matmul %13, %14, %cst_12 {dimension_numbers = #tpu.dot_dimension_numbers<[1], [0], [0], [1], [0, 0, 1, 1], [], []>} : vector<8x32xf32>, vector<32x32xf32>, vector<8x32xf32> -> vector<8x32xf32>
    %c0_13 = arith.constant 0 : index
    %c0_14 = arith.constant 0 : index
    %16 = vector.load %arg9[%c0_13, %c0_14] : memref<1x32xf32, #tpu.memory_space<vmem>>, vector<1x32xf32>
    %17 = vector.broadcast %16 : vector<1x32xf32> to vector<8x32xf32>
    %18 = arith.addf %15, %17 : vector<8x32xf32>
    %19 = vector.extract_strided_slice %18 {offsets = [0, 0], sizes = [8, 16], strides = [1, 1]} : vector<8x32xf32> to vector<8x16xf32>
    %20 = vector.extract_strided_slice %18 {offsets = [0, 16], sizes = [8, 16], strides = [1, 1]} : vector<8x32xf32> to vector<8x16xf32>
    %cst_15 = arith.constant 5.000000e-01 : f32
    %21 = vector.broadcast %cst_15 : f32 to vector<8x16xf32>
    %22 = arith.mulf %21, %20 : vector<8x16xf32>
    %23 = math.exp %22 : vector<8x16xf32>
    %c0_16 = arith.constant 0 : index
    %c0_17 = arith.constant 0 : index
    %24 = vector.load %arg1[%c0_16, %c0_17] : memref<8x16xf32, #tpu.memory_space<vmem>>, vector<8x16xf32>
    %25 = arith.mulf %23, %24 : vector<8x16xf32>
    %26 = arith.addf %19, %25 : vector<8x16xf32>
    %c0_18 = arith.constant 0 : index
    %c0_19 = arith.constant 0 : index
    %27 = vector.load %arg10[%c0_18, %c0_19] : memref<16x32xf32, #tpu.memory_space<vmem>>, vector<16x32xf32>
    %cst_20 = arith.constant dense<0.000000e+00> : vector<8x32xf32>
    %28 = tpu.matmul %26, %27, %cst_20 {dimension_numbers = #tpu.dot_dimension_numbers<[1], [0], [0], [1], [0, 0, 1, 1], [], []>} : vector<8x16xf32>, vector<16x32xf32>, vector<8x32xf32> -> vector<8x32xf32>
    %c0_21 = arith.constant 0 : index
    %c0_22 = arith.constant 0 : index
    %29 = vector.load %arg11[%c0_21, %c0_22] : memref<1x32xf32, #tpu.memory_space<vmem>>, vector<1x32xf32>
    %30 = vector.broadcast %29 : vector<1x32xf32> to vector<8x32xf32>
    %31 = arith.addf %28, %30 : vector<8x32xf32>
    %cst_23 = arith.constant 0.000000e+00 : f32
    %32 = vector.broadcast %cst_23 : f32 to vector<8x32xf32>
    %33 = arith.maximumf %31, %32 : vector<8x32xf32>
    %c0_24 = arith.constant 0 : index
    %c0_25 = arith.constant 0 : index
    %34 = vector.load %arg12[%c0_24, %c0_25] : memref<32x384xf32, #tpu.memory_space<vmem>>, vector<32x384xf32>
    %cst_26 = arith.constant dense<0.000000e+00> : vector<8x384xf32>
    %35 = tpu.matmul %33, %34, %cst_26 {dimension_numbers = #tpu.dot_dimension_numbers<[1], [0], [0], [1], [0, 0, 1, 1], [], []>} : vector<8x32xf32>, vector<32x384xf32>, vector<8x384xf32> -> vector<8x384xf32>
    %c0_27 = arith.constant 0 : index
    %c0_28 = arith.constant 0 : index
    %36 = vector.load %arg13[%c0_27, %c0_28] : memref<1x384xf32, #tpu.memory_space<vmem>>, vector<1x384xf32>
    %37 = vector.broadcast %36 : vector<1x384xf32> to vector<8x384xf32>
    %38 = arith.addf %35, %37 : vector<8x384xf32>
    %c0_29 = arith.constant 0 : index
    %c0_30 = arith.constant 0 : index
    %39 = vector.load %arg4[%c0_29, %c0_30] : memref<1x384xf32, #tpu.memory_space<vmem>>, vector<1x384xf32>
    %40 = vector.broadcast %39 : vector<1x384xf32> to vector<8x384xf32>
    %41 = arith.mulf %38, %40 : vector<8x384xf32>
    %c0_31 = arith.constant 0 : index
    %c0_32 = arith.constant 0 : index
    %42 = vector.load %arg5[%c0_31, %c0_32] : memref<1x384xf32, #tpu.memory_space<vmem>>, vector<1x384xf32>
    %43 = vector.broadcast %42 : vector<1x384xf32> to vector<8x384xf32>
    %44 = arith.addf %41, %43 : vector<8x384xf32>
    %c0_33 = arith.constant 0 : index
    %c0_34 = arith.constant 0 : index
    %45 = vector.load %arg14[%c0_33, %c0_34] : memref<8x384xf32, #tpu.memory_space<vmem>>, vector<8x384xf32>
    tpu.vector_store %arg14[%c0_33, %c0_34], %44 {strides = array<i32>} : memref<8x384xf32, #tpu.memory_space<vmem>>, vector<8x384xf32>,
    %cst_35 = arith.constant 0.000000e+00 : f32
    %46 = vector.broadcast %cst_35 : f32 to vector<8x80xf32>
    %47 = tpu.concatenate %18, %26, %46 in 1 : vector<8x32xf32>, vector<8x16xf32>, vector<8x80xf32> -> vector<8x128xf32>
    %c0_36 = arith.constant 0 : index
    %c0_37 = arith.constant 0 : index
    %48 = vector.load %arg15[%c0_36, %c0_37] : memref<8x128xf32, #tpu.memory_space<vmem>>, vector<8x128xf32>
    tpu.vector_store %arg15[%c0_36, %c0_37], %47 {strides = array<i32>} : memref<8x128xf32, #tpu.memory_space<vmem>>, vector<8x128xf32>,
    return
  }
}

</mosaic_0001>

<llo_original>
// kernel: neg.9
$region0: #{neg.9}
  #allocation0 [shape = 's32[1]{0}', space=sflag, size = 0x4, scoped, tag = 'scoped memory for neg.9']
  %s0 = inlined_call_operand.vmem [shape: f32[32], index: 0, kind: input, shape index: {}]
  %s1 = inlined_call_operand.vmem [shape: f32[32], index: 1, kind: output, shape index: {}]
  %v2 = vld [vmem:[%s0] sm:$0x1]
  %3 = xla_tuple %v2
  %4 = xla_tuple %3
  %v5 = vxor.u32 %v2, 2147483648
  %6 = xla_tuple %v5
  %7 = vst [vmem:[%s1] sm:$0x1] %v5

// kernel: mul.6
$region0: #{mul.6}
  #allocation0 [shape = 's32[1]{0}', space=sflag, size = 0x4, scoped, tag = 'scoped memory for mul.6']
  %s0 = inlined_call_operand.vmem [shape: f32[1,256], index: 0, kind: input, shape index: {}]
  %s1 = inlined_call_operand.vmem [shape: f32[1,256], index: 1, kind: input, shape index: {}]
  %s2 = inlined_call_operand.vmem [shape: f32[1,256], index: 2, kind: output, shape index: {}]
  %v3 = vld [vmem:[%s0] sm:$0x1]
  %v4 = vld [vmem:[%s1] sm:$0x1]
  %5 = xla_tuple %v3, %v4
  %6 = xla_tuple %5
  %v7 = vmul.f32 %v3, %v4
  %8 = xla_tuple %v7
  %9 = vst [vmem:[%s2] sm:$0x1] %v7
  %s10 = scalar_lea.vmem %s0, 1
  %v11 = vld [vmem:[%s10] sm:$0x1]
  %s12 = scalar_lea.vmem %s1, 1
  %v13 = vld [vmem:[%s12] sm:$0x1]
  %14 = xla_tuple %v11, %v13
  %15 = xla_tuple %14
  %v16 = vmul.f32 %v11, %v13
  %17 = xla_tuple %v16
  %s18 = scalar_lea.vmem %s2, 1
  %19 = vst [vmem:[%s18] sm:$0x1] %v16

// kernel: tile.19
$region0: #{tile.19}
  %s0 = inlined_call_operand.vmem [shape: f32[8,32], index: 0, kind: input, shape index: {}]
  %s1 = inlined_call_operand.vmem [shape: f32[256], index: 1, kind: output, shape index: {}]
  $region1: #{tile.19} parent=0
    #allocation0 [shape = 'u8[4096]{0}', space=vmem, size = 0x1000, scoped, tag = 'scoped mem for output reshape']
    %s2 = smov 3
    %v3 = vld [vmem:[%s0] ss:$4 sm:%s2]
    %vm4 = vcmask 261120
    %5 = vst.msk [vmem:[#allocation0] sm:$0x3] %vm4, %v3
    %s6 = scalar_lea.vmem %s0, 3
    %s7 = smov 3
    %v8 = vld [vmem:[%s6] ss:$4 sm:%s7]
    %9 = vrot.lane.b32.xlu0 %v8, 96
    %v10 = vpop.permute.xlu0 %9
    %vm11 = vcmask 1048320
    %12 = vst.msk [vmem:[#allocation0] sm:$0x3] %vm11, %v10
    %s13 = scalar_lea.vmem %s0, 2
    %s14 = smov 3
    %v15 = vld [vmem:[%s13] ss:$4 sm:%s14]
    %16 = vrot.lane.b32.xlu0 %v15, 64
    %v17 = vpop.permute.xlu0 %16
    %vm18 = vcmask 785920
    %19 = vst.msk [vmem:[#allocation0] sm:$0x3] %vm18, %v17
    %s20 = scalar_lea.vmem %s0, 1
    %s21 = smov 3
    %v22 = vld [vmem:[%s20] ss:$4 sm:%s21]
    %23 = vrot.lane.b32.xlu0 %v22, 32
    %v24 = vpop.permute.xlu0 %23
    %vm25 = vcmask 523520
    %26 = vst.msk [vmem:[#allocation0] sm:$0x3] %vm25, %v24
    %s28 = sshllo.u32 0, 2
    %v30 = vld [vmem:[#allocation0] sm:%s28]
    %s31 = sshllo.u32 0, 2
    %32 = vst [vmem:[%s1] sm:%s31] %v30

// kernel: _generator_forward.1
$region0: #{_generator_forward.1}
  #allocation0 [shape = 'u32[]', space=smem, size = 0x4, offset = 0x4, fixed_abs, tag = 'smem constant byte address 0x4 - core index']
  #allocation1 [shape = 'u32[144,128]{1,0:T(1,128)}', space=vmem, size = 0x12000, scoped, tag = 'internal scratch']
  %s0 = inlined_call_operand.vmem [shape: f32[8,256], index: 0, kind: input, shape index: {}]
  %s1 = inlined_call_operand.vmem [shape: f32[8,16], index: 1, kind: input, shape index: {}]
  %s2 = inlined_call_operand.vmem [shape: f32[1,256], index: 2, kind: input, shape index: {}]
  %s3 = inlined_call_operand.vmem [shape: f32[1,256], index: 3, kind: input, shape index: {}]
  %s4 = inlined_call_operand.vmem [shape: f32[1,384], index: 4, kind: input, shape index: {}]
  %s5 = inlined_call_operand.vmem [shape: f32[1,384], index: 5, kind: input, shape index: {}]
  %s6 = inlined_call_operand.vmem [shape: f32[256,32], index: 6, kind: input, shape index: {}]
  %s7 = inlined_call_operand.vmem [shape: f32[1,32], index: 7, kind: input, shape index: {}]
  %s8 = inlined_call_operand.vmem [shape: f32[32,32], index: 8, kind: input, shape index: {}]
  %s9 = inlined_call_operand.vmem [shape: f32[1,32], index: 9, kind: input, shape index: {}]
  %s10 = inlined_call_operand.vmem [shape: f32[16,32], index: 10, kind: input, shape index: {}]
  %s11 = inlined_call_operand.vmem [shape: f32[1,32], index: 11, kind: input, shape index: {}]
  %s12 = inlined_call_operand.vmem [shape: f32[32,384], index: 12, kind: input, shape index: {}]
  %s13 = inlined_call_operand.vmem [shape: f32[1,384], index: 13, kind: input, shape index: {}]
  %s14 = inlined_call_operand.vmem [shape: f32[8,384], index: 14, kind: output, shape index: {0}]
  %s15 = inlined_call_operand.vmem [shape: f32[8,128], index: 15, kind: output, shape index: {1}]
  %16 = xla_tuple %s14, %s15
  %s17 = sld [smem:[#allocation0]]
  $region74: #{_generator_forward.1} parent=0
    _
  %s19 = ssub.s32 1, %s17
  %s20 = scalar_select 0, %s19, %s17
  // Predicated region
  $region2: #{_generator_forward.1} parent=0 // pred_check
    _
  $region3: #{_generator_forward.1} parent=0 // pred_check_branch
    %22 = sbr.rel (0) target = $region5
  $region4: #{_generator_forward.1} parent=0 // pred_region
    _
  $region5: #{_generator_forward.1} parent=0 // pred_fallthru
    _
  // Predicated region
  $region6: #{_generator_forward.1} parent=0 // pred_check
    _
  $region7: #{_generator_forward.1} parent=0 // pred_check_branch
    %24 = sbr.rel (0) target = $region9
  $region8: #{_generator_forward.1} parent=0 // pred_region
    _
  $region9: #{_generator_forward.1} parent=0 // pred_fallthru
    _
  // Predicated region
  $region10: #{_generator_forward.1} parent=0 // pred_check
    _
  $region11: #{_generator_forward.1} parent=0 // pred_check_branch
    %26 = sbr.rel (0) target = $region13
  $region12: #{_generator_forward.1} parent=0 // pred_region
    _
  $region13: #{_generator_forward.1} parent=0 // pred_fallthru
    _
  // Predicated region
  $region14: #{_generator_forward.1} parent=0 // pred_check
    _
  $region15: #{_generator_forward.1} parent=0 // pred_check_branch
    %28 = sbr.rel (0) target = $region17
  $region16: #{_generator_forward.1} parent=0 // pred_region
    _
  $region17: #{_generator_forward.1} parent=0 // pred_fallthru
    _
  // Predicated region
  $region18: #{_generator_forward.1} parent=0 // pred_check
    _
  $region19: #{_generator_forward.1} parent=0 // pred_check_branch
    %30 = sbr.rel (0) target = $region21
  $region20: #{_generator_forward.1} parent=0 // pred_region
    _
  $region21: #{_generator_forward.1} parent=0 // pred_fallthru
    _
  // Predicated region
  $region22: #{_generator_forward.1} parent=0 // pred_check
    _
  $region23: #{_generator_forward.1} parent=0 // pred_check_branch
    %32 = sbr.rel (0) target = $region25
  $region24: #{_generator_forward.1} parent=0 // pred_region
    _
  $region25: #{_generator_forward.1} parent=0 // pred_fallthru
    _
  // Predicated region
  $region26: #{_generator_forward.1} parent=0 // pred_check
    _
  $region27: #{_generator_forward.1} parent=0 // pred_check_branch
    %34 = sbr.rel (0) target = $region29
  $region28: #{_generator_forward.1} parent=0 // pred_region
    _
  $region29: #{_generator_forward.1} parent=0 // pred_fallthru
    _
  // Predicated region
  $region30: #{_generator_forward.1} parent=0 // pred_check
    _
  $region31: #{_generator_forward.1} parent=0 // pred_check_branch
    %36 = sbr.rel (0) target = $region33
  $region32: #{_generator_forward.1} parent=0 // pred_region
    _
  $region33: #{_generator_forward.1} parent=0 // pred_fallthru
    _
  // Predicated region
  $region34: #{_generator_forward.1} parent=0 // pred_check
    _
  $region35: #{_generator_forward.1} parent=0 // pred_check_branch
    %38 = sbr.rel (0) target = $region37
  $region36: #{_generator_forward.1} parent=0 // pred_region
    _
  $region37: #{_generator_forward.1} parent=0 // pred_fallthru
    _
  // Predicated region
  $region38: #{_generator_forward.1} parent=0 // pred_check
    _
  $region39: #{_generator_forward.1} parent=0 // pred_check_branch
    %40 = sbr.rel (0) target = $region41
  $region40: #{_generator_forward.1} parent=0 // pred_region
    _
  $region41: #{_generator_forward.1} parent=0 // pred_fallthru
    _
  // Predicated region
  $region42: #{_generator_forward.1} parent=0 // pred_check
    _
  $region43: #{_generator_forward.1} parent=0 // pred_check_branch
    %42 = sbr.rel (0) target = $region45
  $region44: #{_generator_forward.1} parent=0 // pred_region
    _
  $region45: #{_generator_forward.1} parent=0 // pred_fallthru
    _
  // Predicated region
  $region46: #{_generator_forward.1} parent=0 // pred_check
    _
  $region47: #{_generator_forward.1} parent=0 // pred_check_branch
    %44 = sbr.rel (0) target = $region49
  $region48: #{_generator_forward.1} parent=0 // pred_region
    _
  $region49: #{_generator_forward.1} parent=0 // pred_fallthru
    _
  // Predicated region
  $region50: #{_generator_forward.1} parent=0 // pred_check
    _
  $region51: #{_generator_forward.1} parent=0 // pred_check_branch
    %46 = sbr.rel (0) target = $region53
  $region52: #{_generator_forward.1} parent=0 // pred_region
    _
  $region53: #{_generator_forward.1} parent=0 // pred_fallthru
    _
  // Predicated region
  $region54: #{_generator_forward.1} parent=0 // pred_check
    _
  $region55: #{_generator_forward.1} parent=0 // pred_check_branch
    %48 = sbr.rel (0) target = $region57
  $region56: #{_generator_forward.1} parent=0 // pred_region
    _
  $region57: #{_generator_forward.1} parent=0 // pred_fallthru
    _
  %v49 = vld [vmem:[%s0] sm:$0xff]
  %v50 = vld [vmem:[%s0 + $0x8] sm:$0xff]
  %v51 = vld [vmem:[%s2] sm:$0x3]
  %v53 = vlaneseq
  %v54 = vshrl.u32 %v53, 7
  %v55 = vsub.s32 0, %v54
  %v56 = vrot.slane %v51, %v55
  %v57 = vlaneseq
  %v58 = vshrl.u32 %v57, 7
  %v59 = vsub.s32 1, %v58
  %v60 = vrot.slane %v51, %v59
  %v63 = vmul.f32 %v49, %v56
  %v64 = vmul.f32 %v50, %v60
  %v65 = vld [vmem:[%s3] sm:$0x3]
  %v67 = vlaneseq
  %v68 = vshrl.u32 %v67, 7
  %v69 = vsub.s32 0, %v68
  %v70 = vrot.slane %v65, %v69
  %v71 = vlaneseq
  %v72 = vshrl.u32 %v71, 7
  %v73 = vsub.s32 1, %v72
  %v74 = vrot.slane %v65, %v73
  %v77 = vadd.f32 %v63, %v70
  %v78 = vadd.f32 %v64, %v74
  %v79 = vld [vmem:[%s6] sm:$0xff]
  %v80 = vld [vmem:[%s6 + $0x8] sm:$0xff]
  %v81 = vld [vmem:[%s6 + $0x10] sm:$0xff]
  %v82 = vld [vmem:[%s6 + $0x18] sm:$0xff]
  %v83 = vld [vmem:[%s6 + $0x20] sm:$0xff]
  %v84 = vld [vmem:[%s6 + $0x28] sm:$0xff]
  %v85 = vld [vmem:[%s6 + $0x30] sm:$0xff]
  %v86 = vld [vmem:[%s6 + $0x38] sm:$0xff]
  %v87 = vld [vmem:[%s6 + $0x40] sm:$0xff]
  %v88 = vld [vmem:[%s6 + $0x48] sm:$0xff]
  %v89 = vld [vmem:[%s6 + $0x50] sm:$0xff]
  %v90 = vld [vmem:[%s6 + $0x58] sm:$0xff]
  %v91 = vld [vmem:[%s6 + $0x60] sm:$0xff]
  %v92 = vld [vmem:[%s6 + $0x68] sm:$0xff]
  %v93 = vld [vmem:[%s6 + $0x70] sm:$0xff]
  %v94 = vld [vmem:[%s6 + $0x78] sm:$0xff]
  %v95 = vld [vmem:[%s6 + $0x80] sm:$0xff]
  %v96 = vld [vmem:[%s6 + $0x88] sm:$0xff]
  %v97 = vld [vmem:[%s6 + $0x90] sm:$0xff]
  %v98 = vld [vmem:[%s6 + $0x98] sm:$0xff]
  %v99 = vld [vmem:[%s6 + $0xa0] sm:$0xff]
  %v100 = vld [vmem:[%s6 + $0xa8] sm:$0xff]
  %v101 = vld [vmem:[%s6 + $0xb0] sm:$0xff]
  %v102 = vld [vmem:[%s6 + $0xb8] sm:$0xff]
  %v103 = vld [vmem:[%s6 + $0xc0] sm:$0xff]
  %v104 = vld [vmem:[%s6 + $0xc8] sm:$0xff]
  %v105 = vld [vmem:[%s6 + $0xd0] sm:$0xff]
  %v106 = vld [vmem:[%s6 + $0xd8] sm:$0xff]
  %v107 = vld [vmem:[%s6 + $0xe0] sm:$0xff]
  %v108 = vld [vmem:[%s6 + $0xe8] sm:$0xff]
  %v109 = vld [vmem:[%s6 + $0xf0] sm:$0xff]
  %v110 = vld [vmem:[%s6 + $0xf8] sm:$0xff]
  %v111 = vld [vmem:[%s7] sm:$0x1]
  %v113 = vlaneseq
  %v114 = vshrl.u32 %v113, 7
  %v115 = vsub.s32 0, %v114
  %v116 = vrot.slane %v111, %v115
  %118 = vmatprep.subr.mxu0 0.0
  %119 = vmatpush1.msra.mxu0 %v79
  %120 = vmatprep.subr.mxu0 0.0
  %121 = vmatpush1.msra.mxu0 %v80
  %122 = vmatprep.subr.mxu0 0.0
  %123 = vmatpush1.msra.mxu0 %v81
  %124 = vmatprep.subr.mxu0 0.0
  %125 = vmatpush1.msra.mxu0 %v82
  %126 = vmatprep.subr.mxu0 0.0
  %127 = vmatpush1.msra.mxu0 %v83
  %128 = vmatprep.subr.mxu0 0.0
  %129 = vmatpush1.msra.mxu0 %v84
  %130 = vmatprep.subr.mxu0 0.0
  %131 = vmatpush1.msra.mxu0 %v85
  %132 = vmatprep.subr.mxu0 0.0
  %133 = vmatpush1.msra.mxu0 %v86
  %134 = vmatprep.subr.mxu0 0.0
  %135 = vmatpush1.msra.mxu0 %v87
  %136 = vmatprep.subr.mxu0 0.0
  %137 = vmatpush1.msra.mxu0 %v88
  %138 = vmatprep.subr.mxu0 0.0
  %139 = vmatpush1.msra.mxu0 %v89
  %140 = vmatprep.subr.mxu0 0.0
  %141 = vmatpush1.msra.mxu0 %v90
  %142 = vmatprep.subr.mxu0 0.0
  %143 = vmatpush1.msra.mxu0 %v91
  %144 = vmatprep.subr.mxu0 0.0
  %145 = vmatpush1.msra.mxu0 %v92
  %146 = vmatprep.subr.mxu0 0.0
  %147 = vmatpush1.msra.mxu0 %v93
  %148 = vmatprep.subr.mxu0 0.0
  %149 = vmatpush1.msra.mxu0 %v94
  %150 = vmatprep.subr.mxu0 0.0
  %151 = vmatpush1.msra.mxu0 %v95
  %152 = vmatprep.subr.mxu0 0.0
  %153 = vmatpush1.msra.mxu0 %v96
  %154 = vmatprep.subr.mxu0 0.0
  %155 = vmatpush1.msra.mxu0 %v97
  %156 = vmatprep.subr.mxu0 0.0
  %157 = vmatpush1.msra.mxu0 %v98
  %158 = vmatprep.subr.mxu0 0.0
  %159 = vmatpush1.msra.mxu0 %v99
  %160 = vmatprep.subr.mxu0 0.0
  %161 = vmatpush1.msra.mxu0 %v100
  %162 = vmatprep.subr.mxu0 0.0
  %163 = vmatpush1.msra.mxu0 %v101
  %164 = vmatprep.subr.mxu0 0.0
  %165 = vmatpush1.msra.mxu0 %v102
  %166 = vmatprep.subr.mxu0 0.0
  %167 = vmatpush1.msra.mxu0 %v103
  %168 = vmatprep.subr.mxu0 0.0
  %169 = vmatpush1.msra.mxu0 %v104
  %170 = vmatprep.subr.mxu0 0.0
  %171 = vmatpush1.msra.mxu0 %v105
  %172 = vmatprep.subr.mxu0 0.0
  %173 = vmatpush1.msra.mxu0 %v106
  %174 = vmatprep.subr.mxu0 0.0
  %175 = vmatpush1.msra.mxu0 %v107
  %176 = vmatprep.subr.mxu0 0.0
  %177 = vmatpush1.msra.mxu0 %v108
  %178 = vmatprep.subr.mxu0 0.0
  %179 = vmatpush1.msra.mxu0 %v109
  %180 = vmatprep.subr.mxu0 0.0
  %181 = vmatpush1.msra.mxu0 %v110
  %182 = vmatprep.mubr.f32.mxu0 %v78
  %183 = vmatmul.mubr.f32.gmra.mrb[0].mxu0 %v77
  %v184 = vpop.f32.mrb[0].mxu0
  %v185 = vadd.f32 %v116, %v184
  %v186 = vpop.f32.mrb[0].mxu0
  %187 = vdwg.mxu0
  %v188 = vmax.f32 %v185, 0.0
  %v189 = vld [vmem:[%s8] sm:$0xff]
  %v190 = vld [vmem:[%s8 + $0x8] sm:$0xff]
  %v191 = vld [vmem:[%s8 + $0x10] sm:$0xff]
  %v192 = vld [vmem:[%s8 + $0x18] sm:$0xff]
  %v193 = vld [vmem:[%s9] sm:$0x1]
  %v195 = vlaneseq
  %v196 = vshrl.u32 %v195, 7
  %v197 = vsub.s32 0, %v196
  %v198 = vrot.slane %v193, %v197
  %vm200 = vcmask 261120
  %v202 = vsel %vm200, %v188, 0
  %204 = vmatprep.subr.mxu0 0.0
  %205 = vmatpush1.msra.mxu0 %v189
  %206 = vmatprep.subr.mxu0 0.0
  %207 = vmatpush1.msra.mxu0 %v190
  %208 = vmatprep.subr.mxu0 0.0
  %209 = vmatpush1.msra.mxu0 %v191
  %210 = vmatprep.subr.mxu0 0.0
  %211 = vmatpush1.msra.mxu0 %v192
  %212 = vmatprep.subr.mxu0 0.0
  %213 = vmatpush1.msra.mxu0 0.0
  %214 = vmatprep.subr.mxu0 0.0
  %215 = vmatpush1.msra.mxu0 0.0
  %216 = vmatprep.subr.mxu0 0.0
  %217 = vmatpush1.msra.mxu0 0.0
  %218 = vmatprep.subr.mxu0 0.0
  %219 = vmatpush1.msra.mxu0 0.0
  %220 = vmatprep.subr.mxu0 0.0
  %221 = vmatpush1.msra.mxu0 0.0
  %222 = vmatprep.subr.mxu0 0.0
  %223 = vmatpush1.msra.mxu0 0.0
  %224 = vmatprep.subr.mxu0 0.0
  %225 = vmatpush1.msra.mxu0 0.0
  %226 = vmatprep.subr.mxu0 0.0
  %227 = vmatpush1.msra.mxu0 0.0
  %228 = vmatprep.subr.mxu0 0.0
  %229 = vmatpush1.msra.mxu0 0.0
  %230 = vmatprep.subr.mxu0 0.0
  %231 = vmatpush1.msra.mxu0 0.0
  %232 = vmatprep.subr.mxu0 0.0
  %233 = vmatpush1.msra.mxu0 0.0
  %234 = vmatprep.subr.mxu0 0.0
  %235 = vmatpush1.msra.mxu0 0.0
  %236 = vmatprep.subr.mxu0 0.0
  %237 = vmatpush1.msra.mxu0 0.0
  %238 = vmatprep.subr.mxu0 0.0
  %239 = vmatpush1.msra.mxu0 0.0
  %240 = vmatprep.subr.mxu0 0.0
  %241 = vmatpush1.msra.mxu0 0.0
  %242 = vmatprep.subr.mxu0 0.0
  %243 = vmatpush1.msra.mxu0 0.0
  %244 = vmatprep.subr.mxu0 0.0
  %245 = vmatpush1.msra.mxu0 0.0
  %246 = vmatprep.subr.mxu0 0.0
  %247 = vmatpush1.msra.mxu0 0.0
  %248 = vmatprep.subr.mxu0 0.0
  %249 = vmatpush1.msra.mxu0 0.0
  %250 = vmatprep.subr.mxu0 0.0
  %251 = vmatpush1.msra.mxu0 0.0
  %252 = vmatprep.subr.mxu0 0.0
  %253 = vmatpush1.msra.mxu0 0.0
  %254 = vmatprep.subr.mxu0 0.0
  %255 = vmatpush1.msra.mxu0 0.0
  %256 = vmatprep.subr.mxu0 0.0
  %257 = vmatpush1.msra.mxu0 0.0
  %258 = vmatprep.subr.mxu0 0.0
  %259 = vmatpush1.msra.mxu0 0.0
  %260 = vmatprep.subr.mxu0 0.0
  %261 = vmatpush1.msra.mxu0 0.0
  %262 = vmatprep.subr.mxu0 0.0
  %263 = vmatpush1.msra.mxu0 0.0
  %264 = vmatprep.subr.mxu0 0.0
  %265 = vmatpush1.msra.mxu0 0.0
  %266 = vmatprep.subr.mxu0 0.0
  %267 = vmatpush1.msra.mxu0 0.0
  %268 = vmatprep.mubr.f32.mxu0 0.0
  %269 = vmatmul.mubr.f32.gmra.mrb[0].mxu0 %v202
  %v270 = vpop.f32.mrb[0].mxu0
  %v271 = vadd.f32 %v198, %v270
  %v272 = vpop.f32.mrb[0].mxu0
  %273 = vdwg.mxu0
  %v274 = vmul.f32 %v271, 0.5
  %v275 = vmul.f32 %v274, 1.442695
  %v276 = vpow.pop %v275
  %v277 = vld [vmem:[%s1] sm:$0xff]
  %279 = vrot.lane.b32.xlu0 %v277, 16
  %v280 = vpop.permute.xlu0 %279
  %v282 = vmul.f32 %v276, %v280
  %284 = vrot.lane.b32.xlu0 %v282, 112
  %v285 = vpop.permute.xlu0 %284
  %v287 = vadd.f32 %v271, %v285
  %v288 = vld [vmem:[%s10] sm:$0xff]
  %v289 = vld [vmem:[%s10 + $0x8] sm:$0xff]
  %v290 = vld [vmem:[%s11] sm:$0x1]
  %v292 = vlaneseq
  %v293 = vshrl.u32 %v292, 7
  %v294 = vsub.s32 0, %v293
  %v295 = vrot.slane %v290, %v294
  %vm297 = vcmask 130048
  %v299 = vsel %vm297, %v287, 0
  %301 = vmatprep.subr.mxu0 0.0
  %302 = vmatpush1.msra.mxu0 %v288
  %303 = vmatprep.subr.mxu0 0.0
  %304 = vmatpush1.msra.mxu0 %v289
  %305 = vmatprep.subr.mxu0 0.0
  %306 = vmatpush1.msra.mxu0 0.0
  %307 = vmatprep.subr.mxu0 0.0
  %308 = vmatpush1.msra.mxu0 0.0
  %309 = vmatprep.subr.mxu0 0.0
  %310 = vmatpush1.msra.mxu0 0.0
  %311 = vmatprep.subr.mxu0 0.0
  %312 = vmatpush1.msra.mxu0 0.0
  %313 = vmatprep.subr.mxu0 0.0
  %314 = vmatpush1.msra.mxu0 0.0
  %315 = vmatprep.subr.mxu0 0.0
  %316 = vmatpush1.msra.mxu0 0.0
  %317 = vmatprep.subr.mxu0 0.0
  %318 = vmatpush1.msra.mxu0 0.0
  %319 = vmatprep.subr.mxu0 0.0
  %320 = vmatpush1.msra.mxu0 0.0
  %321 = vmatprep.subr.mxu0 0.0
  %322 = vmatpush1.msra.mxu0 0.0
  %323 = vmatprep.subr.mxu0 0.0
  %324 = vmatpush1.msra.mxu0 0.0
  %325 = vmatprep.subr.mxu0 0.0
  %326 = vmatpush1.msra.mxu0 0.0
  %327 = vmatprep.subr.mxu0 0.0
  %328 = vmatpush1.msra.mxu0 0.0
  %329 = vmatprep.subr.mxu0 0.0
  %330 = vmatpush1.msra.mxu0 0.0
  %331 = vmatprep.subr.mxu0 0.0
  %332 = vmatpush1.msra.mxu0 0.0
  %333 = vmatprep.subr.mxu0 0.0
  %334 = vmatpush1.msra.mxu0 0.0
  %335 = vmatprep.subr.mxu0 0.0
  %336 = vmatpush1.msra.mxu0 0.0
  %337 = vmatprep.subr.mxu0 0.0
  %338 = vmatpush1.msra.mxu0 0.0
  %339 = vmatprep.subr.mxu0 0.0
  %340 = vmatpush1.msra.mxu0 0.0
  %341 = vmatprep.subr.mxu0 0.0
  %342 = vmatpush1.msra.mxu0 0.0
  %343 = vmatprep.subr.mxu0 0.0
  %344 = vmatpush1.msra.mxu0 0.0
  %345 = vmatprep.subr.mxu0 0.0
  %346 = vmatpush1.msra.mxu0 0.0
  %347 = vmatprep.subr.mxu0 0.0
  %348 = vmatpush1.msra.mxu0 0.0
  %349 = vmatprep.subr.mxu0 0.0
  %350 = vmatpush1.msra.mxu0 0.0
  %351 = vmatprep.subr.mxu0 0.0
  %352 = vmatpush1.msra.mxu0 0.0
  %353 = vmatprep.subr.mxu0 0.0
  %354 = vmatpush1.msra.mxu0 0.0
  %355 = vmatprep.subr.mxu0 0.0
  %356 = vmatpush1.msra.mxu0 0.0
  %357 = vmatprep.subr.mxu0 0.0
  %358 = vmatpush1.msra.mxu0 0.0
  %359 = vmatprep.subr.mxu0 0.0
  %360 = vmatpush1.msra.mxu0 0.0
  %361 = vmatprep.subr.mxu0 0.0
  %362 = vmatpush1.msra.mxu0 0.0
  %363 = vmatprep.subr.mxu0 0.0
  %364 = vmatpush1.msra.mxu0 0.0
  %365 = vmatprep.mubr.f32.mxu0 0.0
  %366 = vmatmul.mubr.f32.gmra.mrb[0].mxu0 %v299
  %v367 = vpop.f32.mrb[0].mxu0
  %v368 = vadd.f32 %v295, %v367
  %v369 = vpop.f32.mrb[0].mxu0
  %370 = vdwg.mxu0
  %v371 = vmax.f32 %v368, 0.0
  %v372 = vld [vmem:[%s12] sm:$0xff]
  %v373 = vld [vmem:[%s12 + $0x8] sm:$0xff]
  %v374 = vld [vmem:[%s12 + $0x10] sm:$0xff]
  %v375 = vld [vmem:[%s12 + $0x18] sm:$0xff]
  %v376 = vld [vmem:[%s12 + $0x20] sm:$0xff]
  %v377 = vld [vmem:[%s12 + $0x28] sm:$0xff]
  %v378 = vld [vmem:[%s12 + $0x30] sm:$0xff]
  %v379 = vld [vmem:[%s12 + $0x38] sm:$0xff]
  %v380 = vld [vmem:[%s12 + $0x40] sm:$0xff]
  %v381 = vld [vmem:[%s12 + $0x48] sm:$0xff]
  %v382 = vld [vmem:[%s12 + $0x50] sm:$0xff]
  %v383 = vld [vmem:[%s12 + $0x58] sm:$0xff]
  %v384 = vld [vmem:[%s13] sm:$0x7]
  %v386 = vlaneseq
  %v387 = vshrl.u32 %v386, 7
  %v388 = vsub.s32 0, %v387
  %v389 = vrot.slane %v384, %v388
  %v390 = vlaneseq
  %v391 = vshrl.u32 %v390, 7
  %v392 = vsub.s32 1, %v391
  %v393 = vrot.slane %v384, %v392
  %v394 = vlaneseq
  %v395 = vshrl.u32 %v394, 7
  %v396 = vsub.s32 2, %v395
  %v397 = vrot.slane %v384, %v396
  %v402 = vsel %vm200, %v371, 0
  %404 = vmatprep.subr.mxu0 %v373
  %405 = vmatpush1.msra.mxu0 %v372
  %406 = vmatprep.subr.mxu0 %v376
  %407 = vmatpush1.msra.mxu0 %v375
  %408 = vmatprep.subr.mxu0 %v379
  %409 = vmatpush1.msra.mxu0 %v378
  %410 = vmatprep.subr.mxu0 %v382
  %411 = vmatpush1.msra.mxu0 %v381
  %412 = vmatprep.subr.mxu0 0.0
  %413 = vmatpush1.msra.mxu0 0.0
  %414 = vmatprep.subr.mxu0 0.0
  %415 = vmatpush1.msra.mxu0 0.0
  %416 = vmatprep.subr.mxu0 0.0
  %417 = vmatpush1.msra.mxu0 0.0
  %418 = vmatprep.subr.mxu0 0.0
  %419 = vmatpush1.msra.mxu0 0.0
  %420 = vmatprep.subr.mxu0 0.0
  %421 = vmatpush1.msra.mxu0 0.0
  %422 = vmatprep.subr.mxu0 0.0
  %423 = vmatpush1.msra.mxu0 0.0
  %424 = vmatprep.subr.mxu0 0.0
  %425 = vmatpush1.msra.mxu0 0.0
  %426 = vmatprep.subr.mxu0 0.0
  %427 = vmatpush1.msra.mxu0 0.0
  %428 = vmatprep.subr.mxu0 0.0
  %429 = vmatpush1.msra.mxu0 0.0
  %430 = vmatprep.subr.mxu0 0.0
  %431 = vmatpush1.msra.mxu0 0.0
  %432 = vmatprep.subr.mxu0 0.0
  %433 = vmatpush1.msra.mxu0 0.0
  %434 = vmatprep.subr.mxu0 0.0
  %435 = vmatpush1.msra.mxu0 0.0
  %436 = vmatprep.subr.mxu0 0.0
  %437 = vmatpush1.msra.mxu0 0.0
  %438 = vmatprep.subr.mxu0 0.0
  %439 = vmatpush1.msra.mxu0 0.0
  %440 = vmatprep.subr.mxu0 0.0
  %441 = vmatpush1.msra.mxu0 0.0
  %442 = vmatprep.subr.mxu0 0.0
  %443 = vmatpush1.msra.mxu0 0.0
  %444 = vmatprep.subr.mxu0 0.0
  %445 = vmatpush1.msra.mxu0 0.0
  %446 = vmatprep.subr.mxu0 0.0
  %447 = vmatpush1.msra.mxu0 0.0
  %448 = vmatprep.subr.mxu0 0.0
  %449 = vmatpush1.msra.mxu0 0.0
  %450 = vmatprep.subr.mxu0 0.0
  %451 = vmatpush1.msra.mxu0 0.0
  %452 = vmatprep.subr.mxu0 0.0
  %453 = vmatpush1.msra.mxu0 0.0
  %454 = vmatprep.subr.mxu0 0.0
  %455 = vmatpush1.msra.mxu0 0.0
  %456 = vmatprep.subr.mxu0 0.0
  %457 = vmatpush1.msra.mxu0 0.0
  %458 = vmatprep.subr.mxu0 0.0
  %459 = vmatpush1.msra.mxu0 0.0
  %460 = vmatprep.subr.mxu0 0.0
  %461 = vmatpush1.msra.mxu0 0.0
  %462 = vmatprep.subr.mxu0 0.0
  %463 = vmatpush1.msra.mxu0 0.0
  %464 = vmatprep.subr.mxu0 0.0
  %465 = vmatpush1.msra.mxu0 0.0
  %466 = vmatprep.subr.mxu0 0.0
  %467 = vmatpush1.msra.mxu0 0.0
  %468 = vmatprep.mubr.f32.mxu0 0.0
  %469 = vmatmul.mubr.f32.gmra.mrb[0].mxu0 %v402
  %v470 = vpop.f32.mrb[0].mxu0
  %v471 = vadd.f32 %v389, %v470
  %v472 = vpop.f32.mrb[0].mxu0
  %v473 = vadd.f32 %v393, %v472
  %474 = vdwg.mxu0
  %475 = vmatprep.subr.mxu0 0.0
  %476 = vmatpush1.msra.mxu0 %v374
  %477 = vmatprep.subr.mxu0 0.0
  %478 = vmatpush1.msra.mxu0 %v377
  %479 = vmatprep.subr.mxu0 0.0
  %480 = vmatpush1.msra.mxu0 %v380
  %481 = vmatprep.subr.mxu0 0.0
  %482 = vmatpush1.msra.mxu0 %v383
  %483 = vmatprep.subr.mxu0 0.0
  %484 = vmatpush1.msra.mxu0 0.0
  %485 = vmatprep.subr.mxu0 0.0
  %486 = vmatpush1.msra.mxu0 0.0
  %487 = vmatprep.subr.mxu0 0.0
  %488 = vmatpush1.msra.mxu0 0.0
  %489 = vmatprep.subr.mxu0 0.0
  %490 = vmatpush1.msra.mxu0 0.0
  %491 = vmatprep.subr.mxu0 0.0
  %492 = vmatpush1.msra.mxu0 0.0
  %493 = vmatprep.subr.mxu0 0.0
  %494 = vmatpush1.msra.mxu0 0.0
  %495 = vmatprep.subr.mxu0 0.0
  %496 = vmatpush1.msra.mxu0 0.0
  %497 = vmatprep.subr.mxu0 0.0
  %498 = vmatpush1.msra.mxu0 0.0
  %499 = vmatprep.subr.mxu0 0.0
  %500 = vmatpush1.msra.mxu0 0.0
  %501 = vmatprep.subr.mxu0 0.0
  %502 = vmatpush1.msra.mxu0 0.0
  %503 = vmatprep.subr.mxu0 0.0
  %504 = vmatpush1.msra.mxu0 0.0
  %505 = vmatprep.subr.mxu0 0.0
  %506 = vmatpush1.msra.mxu0 0.0
  %507 = vmatprep.subr.mxu0 0.0
  %508 = vmatpush1.msra.mxu0 0.0
  %509 = vmatprep.subr.mxu0 0.0
  %510 = vmatpush1.msra.mxu0 0.0
  %511 = vmatprep.subr.mxu0 0.0
  %512 = vmatpush1.msra.mxu0 0.0
  %513 = vmatprep.subr.mxu0 0.0
  %514 = vmatpush1.msra.mxu0 0.0
  %515 = vmatprep.subr.mxu0 0.0
  %516 = vmatpush1.msra.mxu0 0.0
  %517 = vmatprep.subr.mxu0 0.0
  %518 = vmatpush1.msra.mxu0 0.0
  %519 = vmatprep.subr.mxu0 0.0
  %520 = vmatpush1.msra.mxu0 0.0
  %521 = vmatprep.subr.mxu0 0.0
  %522 = vmatpush1.msra.mxu0 0.0
  %523 = vmatprep.subr.mxu0 0.0
  %524 = vmatpush1.msra.mxu0 0.0
  %525 = vmatprep.subr.mxu0 0.0
  %526 = vmatpush1.msra.mxu0 0.0
  %527 = vmatprep.subr.mxu0 0.0
  %528 = vmatpush1.msra.mxu0 0.0
  %529 = vmatprep.subr.mxu0 0.0
  %530 = vmatpush1.msra.mxu0 0.0
  %531 = vmatprep.subr.mxu0 0.0
  %532 = vmatpush1.msra.mxu0 0.0
  %533 = vmatprep.subr.mxu0 0.0
  %534 = vmatpush1.msra.mxu0 0.0
  %535 = vmatprep.subr.mxu0 0.0
  %536 = vmatpush1.msra.mxu0 0.0
  %537 = vmatprep.subr.mxu0 0.0
  %538 = vmatpush1.msra.mxu0 0.0
  %539 = vmatprep.mubr.f32.mxu0 0.0
  %540 = vmatmul.mubr.f32.gmra.mrb[0].mxu0 %v402
  %v541 = vpop.f32.mrb[0].mxu0
  %v542 = vadd.f32 %v397, %v541
  %v543 = vpop.f32.mrb[0].mxu0
  %544 = vdwg.mxu0
  %v545 = vld [vmem:[%s4] sm:$0x7]
  %v547 = vlaneseq
  %v548 = vshrl.u32 %v547, 7
  %v549 = vsub.s32 0, %v548
  %v550 = vrot.slane %v545, %v549
  %v551 = vlaneseq
  %v552 = vshrl.u32 %v551, 7
  %v553 = vsub.s32 1, %v552
  %v554 = vrot.slane %v545, %v553
  %v555 = vlaneseq
  %v556 = vshrl.u32 %v555, 7
  %v557 = vsub.s32 2, %v556
  %v558 = vrot.slane %v545, %v557
  %v562 = vmul.f32 %v471, %v550
  %v563 = vmul.f32 %v473, %v554
  %v564 = vmul.f32 %v542, %v558
  %v565 = vld [vmem:[%s5] sm:$0x7]
  %v567 = vlaneseq
  %v568 = vshrl.u32 %v567, 7
  %v569 = vsub.s32 0, %v568
  %v570 = vrot.slane %v565, %v569
  %v571 = vlaneseq
  %v572 = vshrl.u32 %v571, 7
  %v573 = vsub.s32 1, %v572
  %v574 = vrot.slane %v565, %v573
  %v575 = vlaneseq
  %v576 = vshrl.u32 %v575, 7
  %v577 = vsub.s32 2, %v576
  %v578 = vrot.slane %v565, %v577
  %v582 = vadd.f32 %v562, %v570
  %v583 = vadd.f32 %v563, %v574
  %v584 = vadd.f32 %v564, %v578
  %585 = vst [vmem:[%s14] sm:$0xff] %v582
  %586 = vst [vmem:[%s14 + $0x8] sm:$0xff] %v583
  %587 = vst [vmem:[%s14 + $0x10] sm:$0xff] %v584
  %588 = vrot.lane.b32.xlu0 %v287, 32
  %v589 = vpop.permute.xlu0 %588
  %v591 = vsel %vm200, %v271, %v589
  %vm592 = vcmask 392192
  %v593 = vsel %vm592, %v591, 0.0
  %594 = vst [vmem:[%s15] sm:$0xff] %v593
  // Predicated region
  $region58: #{_generator_forward.1} parent=0 // pred_check
    _
  $region59: #{_generator_forward.1} parent=0 // pred_check_branch
    %596 = sbr.rel (0) target = $region61
  $region60: #{_generator_forward.1} parent=0 // pred_region
    _
  $region61: #{_generator_forward.1} parent=0 // pred_fallthru
    _
  // Predicated region
  $region62: #{_generator_forward.1} parent=0 // pred_check
    _
  $region63: #{_generator_forward.1} parent=0 // pred_check_branch
    %598 = sbr.rel (0) target = $region65
  $region64: #{_generator_forward.1} parent=0 // pred_region
    _
  $region65: #{_generator_forward.1} parent=0 // pred_fallthru
    _
  // Predicated region
  $region66: #{_generator_forward.1} parent=0 // pred_check
    _
  $region67: #{_generator_forward.1} parent=0 // pred_check_branch
    %600 = sbr.rel (0) target = $region69
  $region68: #{_generator_forward.1} parent=0 // pred_region
    _
  $region69: #{_generator_forward.1} parent=0 // pred_fallthru
    _
  // Predicated region
  $region70: #{_generator_forward.1} parent=0 // pred_check
    _
  $region71: #{_generator_forward.1} parent=0 // pred_check_branch
    %602 = sbr.rel (0) target = $region73
  $region72: #{_generator_forward.1} parent=0 // pred_region
    _
  $region73: #{_generator_forward.1} parent=0 // pred_fallthru
    _

</llo_original>
